<compile_context>
chip_gen: v7x
topology: tpu7x:2x2x1
jax: 0.10.0
libtpu: 0.0.40
codegen_flags: <defaults>
</compile_context>

<pallas_src>
import functools

import numpy as np
import jax
import jax.numpy as jnp
from jax.experimental import pallas as pl
from jax.experimental.pallas import tpu as pltpu

PI = 3.14159  # matches the torch.jit.script constant exactly (do not "fix" to math.pi)
SQRT_2PI = (2.0 * PI) ** 0.5


def _round_up(x, m):
    return ((x + m - 1) // m) * m


def _gaussian_kernel(x_ref, const_ref, o_ref, *, num_rpes, num_kernels):
    # x_ref     : (TL, R)      rows of flattened input
    # const_ref : (3, R, K)    [mean, 1/(sqrt(2*pi)*std), -0.5/std^2]
    # o_ref     : (TL, R*K)    lane-dense output
    x = x_ref[...].astype(jnp.float32)      # (TL, R)
    mean = const_ref[0]                     # (R, K)
    coef = const_ref[1]                     # (R, K)
    nhiv = const_ref[2]                     # (R, K)

    # R is small and static; an unrolled Python loop keeps K on the lane axis
    # and writes one aligned, full-width K-lane slab per rpe.
    for r in range(num_rpes):
        xr = x[:, r : r + 1]                            # (TL, 1)
        d = xr - mean[r : r + 1, :]                     # (TL, K)
        g = jnp.exp(d * d * nhiv[r : r + 1, :]) * coef[r : r + 1, :]
        o_ref[:, r * num_kernels : (r + 1) * num_kernels] = g.astype(o_ref.dtype)


def gaussian_layer(x, means_w, stds_w, *, tile_rows=2048, out_dtype=None):
    """x: (B, N, M, R) -> (B, N, M, R*K). means_w/stds_w: (R, K).

    out_dtype=None matches the module (.type_as(means.weight)); pass
    jnp.bfloat16 to halve the dominant HBM write stream.
    """
    B, N, M, R = x.shape
    Rw, K = means_w.shape
    assert Rw == R
    L = B * N * M
    if out_dtype is None:
        out_dtype = means_w.dtype
    out_itemsize = np.dtype(out_dtype).itemsize

    # Wrapper-side precompute (done once, not per grid step).
    mean = means_w.astype(jnp.float32)                       # (R, K)
    std = jnp.abs(stds_w.astype(jnp.float32)) + 0.01         # (R, K)
    coef = 1.0 / (SQRT_2PI * std)                            # (R, K)
    nhiv = -0.5 / (std * std)                                # (R, K)
    consts = jnp.stack([mean, coef, nhiv], axis=0)           # (3, R, K) f32

    # Sublane granularity of the *output* dtype (f32: 8, bf16: 16, 8-bit: 32).
    sub = {1: 32, 2: 16}.get(out_itemsize, 8)

    # Tile selection: multiple of the sublane tile, never larger than L
    # (rounded up), and capped so there are >= 4 grid steps when L permits
    # (v7x megacore sharding + DMA/compute overlap on all generations).
    tr = min(_round_up(tile_rows, sub), _round_up(L, sub))
    tr = min(tr, max(sub, _round_up(pl.cdiv(L, 4), sub)))
    tr = max(sub, tr)
    num_tiles = pl.cdiv(L, tr)

    x_flat = x.reshape(L, R).astype(jnp.float32)  # contiguous -> free bitcast

    # Accurate scoped-VMEM estimate: double-buffered in/out tiles + resident
    # constants + headroom. Always passed explicitly (safe on v5e/v6e/v7x).
    needed = (
        2 * (tr * R * 4 + tr * R * K * out_itemsize)
        + 2 * consts.size * 4
        + (2 << 20)
    )
    vmem_limit = max(int(needed), 16 << 20)

    kernel = functools.partial(_gaussian_kernel, num_rpes=R, num_kernels=K)

    out_flat = pl.pallas_call(
        kernel,
        out_shape=jax.ShapeDtypeStruct((L, R * K), out_dtype),
        grid_spec=pltpu.PrefetchScalarGridSpec(
            num_scalar_prefetch=0,
            grid=(num_tiles,),
            in_specs=[
                pl.BlockSpec((tr, R), lambda i: (i, 0)),
                pl.BlockSpec((3, R, K), lambda i: (0, 0, 0)),
            ],
            out_specs=pl.BlockSpec((tr, R * K), lambda i: (i, 0)),
        ),
        compiler_params=pltpu.CompilerParams(
            dimension_semantics=("parallel",),
            vmem_limit_bytes=vmem_limit,
        ),
    )(x_flat, consts)

    return out_flat.reshape(B, N, M, R * K)


def gaussian_layer_ref(x, means_w, stds_w):
    """Pure-JAX reference mirroring the PyTorch forward."""
    mean = means_w.astype(jnp.float32)                       # (R, K)
    std = jnp.abs(stds_w.astype(jnp.float32)) + 0.01         # (R, K)
    xe = x.astype(jnp.float32)[..., None]                    # (B, N, M, R, 1)
    g = jnp.exp(-0.5 * ((xe - mean) / std) ** 2) / (SQRT_2PI * std)
    g = g.astype(means_w.dtype)
    B, N, M, R, K = g.shape
    return g.reshape(B, N, M, R * K)


if __name__ == "__main__":
    # Module config (small shapes): num_rpes=4, num_kernels=128
    num_rpes, num_kernels = 4, 128
    B, N, M = 2, 8, 8

    key = jax.random.PRNGKey(0)
    k_means, k_stds, k_x = jax.random.split(key, 3)

    # torch.nn.init.uniform_(w, 0, 3) equivalents (deterministic, in-script)
    means_w = jax.random.uniform(k_means, (num_rpes, num_kernels),
                                 minval=0.0, maxval=3.0, dtype=jnp.float32)
    stds_w = jax.random.uniform(k_stds, (num_rpes, num_kernels),
                                minval=0.0, maxval=3.0, dtype=jnp.float32)

    x = jax.random.normal(k_x, (B, N, M, num_rpes), dtype=jnp.float32)

    ref = gaussian_layer_ref(x, means_w, stds_w)

    # Default path: output dtype matches means.weight (module semantics).
    out = jax.block_until_ready(gaussian_layer(x, means_w, stds_w))
    assert out.shape == (B, N, M, num_rpes * num_kernels), out.shape
    assert out.dtype == means_w.dtype
    assert jnp.allclose(out, ref, atol=1e-6, rtol=1e-5), float(
        jnp.max(jnp.abs(out - ref))
    )

    # bf16-output path (halves the dominant HBM write stream); loose tolerance
    # because bf16 carries ~8 mantissa bits.
    out_bf16 = jax.block_until_ready(
        gaussian_layer(x, means_w, stds_w, out_dtype=jnp.bfloat16)
    )
    assert out_bf16.dtype == jnp.bfloat16
    assert jnp.allclose(out_bf16.astype(jnp.float32), ref.astype(jnp.float32),
                        atol=1e-2, rtol=2e-2)

    print("KERNEL_OK")
</pallas_src>

<mosaic_0001>
module attributes {stable_mosaic.version = 11 : i64} {
  func.func @_gaussian_kernel(%arg0: i32, %arg1: memref<32x4xf32, #tpu.memory_space<vmem>>, %arg2: memref<3x4x128xf32, #tpu.memory_space<vmem>>, %arg3: memref<32x512xf32, #tpu.memory_space<vmem>>) attributes {dimension_semantics = [#tpu.dimension_semantics<parallel>], iteration_bounds = array<i64: 4>, scalar_prefetch = 0 : i64, scratch_operands = 0 : i64, tpu.core_type = #tpu.core_type<tc>, window_params = [{transform_indices = @transform_0, window_bounds = array<i64: 32, 4>}, {pipeline_mode = #tpu.pipeline_mode<synchronous>, transform_indices = @transform_1, window_bounds = array<i64: 3, 4, 128>}, {transform_indices = @transform_2, window_bounds = array<i64: 32, 512>}]} {
    %c0 = arith.constant 0 : index
    %c0_0 = arith.constant 0 : index
    %0 = vector.load %arg1[%c0, %c0_0] : memref<32x4xf32, #tpu.memory_space<vmem>>, vector<32x4xf32>
    %c0_1 = arith.constant 0 : index
    %c0_2 = arith.constant 0 : index
    %c0_3 = arith.constant 0 : index
    %1 = vector.load %arg2[%c0_1, %c0_2, %c0_3] : memref<3x4x128xf32, #tpu.memory_space<vmem>>, vector<1x4x128xf32>
    %2 = vector.shape_cast %1 : vector<1x4x128xf32> to vector<4x128xf32>
    %c1 = arith.constant 1 : index
    %c0_4 = arith.constant 0 : index
    %c0_5 = arith.constant 0 : index
    %3 = vector.load %arg2[%c1, %c0_4, %c0_5] : memref<3x4x128xf32, #tpu.memory_space<vmem>>, vector<1x4x128xf32>
    %4 = vector.shape_cast %3 : vector<1x4x128xf32> to vector<4x128xf32>
    %c2 = arith.constant 2 : index
    %c0_6 = arith.constant 0 : index
    %c0_7 = arith.constant 0 : index
    %5 = vector.load %arg2[%c2, %c0_6, %c0_7] : memref<3x4x128xf32, #tpu.memory_space<vmem>>, vector<1x4x128xf32>
    %6 = vector.shape_cast %5 : vector<1x4x128xf32> to vector<4x128xf32>
    %7 = vector.extract_strided_slice %0 {offsets = [0, 0], sizes = [32, 1], strides = [1, 1]} : vector<32x4xf32> to vector<32x1xf32>
    %8 = vector.extract_strided_slice %2 {offsets = [0, 0], sizes = [1, 128], strides = [1, 1]} : vector<4x128xf32> to vector<1x128xf32>
    %9 = vector.broadcast %7 : vector<32x1xf32> to vector<32x128xf32>
    %10 = vector.broadcast %8 : vector<1x128xf32> to vector<32x128xf32>
    %11 = arith.subf %9, %10 : vector<32x128xf32>
    %12 = arith.mulf %11, %11 : vector<32x128xf32>
    %13 = vector.extract_strided_slice %6 {offsets = [0, 0], sizes = [1, 128], strides = [1, 1]} : vector<4x128xf32> to vector<1x128xf32>
    %14 = vector.broadcast %13 : vector<1x128xf32> to vector<32x128xf32>
    %15 = arith.mulf %12, %14 : vector<32x128xf32>
    %16 = math.exp %15 : vector<32x128xf32>
    %17 = vector.extract_strided_slice %4 {offsets = [0, 0], sizes = [1, 128], strides = [1, 1]} : vector<4x128xf32> to vector<1x128xf32>
    %18 = vector.broadcast %17 : vector<1x128xf32> to vector<32x128xf32>
    %19 = arith.mulf %16, %18 : vector<32x128xf32>
    %c0_8 = arith.constant 0 : index
    %c0_9 = arith.constant 0 : index
    %20 = vector.load %arg3[%c0_8, %c0_9] : memref<32x512xf32, #tpu.memory_space<vmem>>, vector<32x128xf32>
    tpu.vector_store %arg3[%c0_8, %c0_9], %19 {strides = array<i32>} : memref<32x512xf32, #tpu.memory_space<vmem>>, vector<32x128xf32>,
    %21 = vector.extract_strided_slice %0 {offsets = [0, 1], sizes = [32, 1], strides = [1, 1]} : vector<32x4xf32> to vector<32x1xf32>
    %22 = vector.extract_strided_slice %2 {offsets = [1, 0], sizes = [1, 128], strides = [1, 1]} : vector<4x128xf32> to vector<1x128xf32>
    %23 = vector.broadcast %21 : vector<32x1xf32> to vector<32x128xf32>
    %24 = vector.broadcast %22 : vector<1x128xf32> to vector<32x128xf32>
    %25 = arith.subf %23, %24 : vector<32x128xf32>
    %26 = arith.mulf %25, %25 : vector<32x128xf32>
    %27 = vector.extract_strided_slice %6 {offsets = [1, 0], sizes = [1, 128], strides = [1, 1]} : vector<4x128xf32> to vector<1x128xf32>
    %28 = vector.broadcast %27 : vector<1x128xf32> to vector<32x128xf32>
    %29 = arith.mulf %26, %28 : vector<32x128xf32>
    %30 = math.exp %29 : vector<32x128xf32>
    %31 = vector.extract_strided_slice %4 {offsets = [1, 0], sizes = [1, 128], strides = [1, 1]} : vector<4x128xf32> to vector<1x128xf32>
    %32 = vector.broadcast %31 : vector<1x128xf32> to vector<32x128xf32>
    %33 = arith.mulf %30, %32 : vector<32x128xf32>
    %c0_10 = arith.constant 0 : index
    %c128 = arith.constant 128 : index
    %34 = vector.load %arg3[%c0_10, %c128] : memref<32x512xf32, #tpu.memory_space<vmem>>, vector<32x128xf32>
    tpu.vector_store %arg3[%c0_10, %c128], %33 {strides = array<i32>} : memref<32x512xf32, #tpu.memory_space<vmem>>, vector<32x128xf32>,
    %35 = vector.extract_strided_slice %0 {offsets = [0, 2], sizes = [32, 1], strides = [1, 1]} : vector<32x4xf32> to vector<32x1xf32>
    %36 = vector.extract_strided_slice %2 {offsets = [2, 0], sizes = [1, 128], strides = [1, 1]} : vector<4x128xf32> to vector<1x128xf32>
    %37 = vector.broadcast %35 : vector<32x1xf32> to vector<32x128xf32>
    %38 = vector.broadcast %36 : vector<1x128xf32> to vector<32x128xf32>
    %39 = arith.subf %37, %38 : vector<32x128xf32>
    %40 = arith.mulf %39, %39 : vector<32x128xf32>
    %41 = vector.extract_strided_slice %6 {offsets = [2, 0], sizes = [1, 128], strides = [1, 1]} : vector<4x128xf32> to vector<1x128xf32>
    %42 = vector.broadcast %41 : vector<1x128xf32> to vector<32x128xf32>
    %43 = arith.mulf %40, %42 : vector<32x128xf32>
    %44 = math.exp %43 : vector<32x128xf32>
    %45 = vector.extract_strided_slice %4 {offsets = [2, 0], sizes = [1, 128], strides = [1, 1]} : vector<4x128xf32> to vector<1x128xf32>
    %46 = vector.broadcast %45 : vector<1x128xf32> to vector<32x128xf32>
    %47 = arith.mulf %44, %46 : vector<32x128xf32>
    %c0_11 = arith.constant 0 : index
    %c256 = arith.constant 256 : index
    %48 = vector.load %arg3[%c0_11, %c256] : memref<32x512xf32, #tpu.memory_space<vmem>>, vector<32x128xf32>
    tpu.vector_store %arg3[%c0_11, %c256], %47 {strides = array<i32>} : memref<32x512xf32, #tpu.memory_space<vmem>>, vector<32x128xf32>,
    %49 = vector.extract_strided_slice %0 {offsets = [0, 3], sizes = [32, 1], strides = [1, 1]} : vector<32x4xf32> to vector<32x1xf32>
    %50 = vector.extract_strided_slice %2 {offsets = [3, 0], sizes = [1, 128], strides = [1, 1]} : vector<4x128xf32> to vector<1x128xf32>
    %51 = vector.broadcast %49 : vector<32x1xf32> to vector<32x128xf32>
    %52 = vector.broadcast %50 : vector<1x128xf32> to vector<32x128xf32>
    %53 = arith.subf %51, %52 : vector<32x128xf32>
    %54 = arith.mulf %53, %53 : vector<32x128xf32>
    %55 = vector.extract_strided_slice %6 {offsets = [3, 0], sizes = [1, 128], strides = [1, 1]} : vector<4x128xf32> to vector<1x128xf32>
    %56 = vector.broadcast %55 : vector<1x128xf32> to vector<32x128xf32>
    %57 = arith.mulf %54, %56 : vector<32x128xf32>
    %58 = math.exp %57 : vector<32x128xf32>
    %59 = vector.extract_strided_slice %4 {offsets = [3, 0], sizes = [1, 128], strides = [1, 1]} : vector<4x128xf32> to vector<1x128xf32>
    %60 = vector.broadcast %59 : vector<1x128xf32> to vector<32x128xf32>
    %61 = arith.mulf %58, %60 : vector<32x128xf32>
    %c0_12 = arith.constant 0 : index
    %c384 = arith.constant 384 : index
    %62 = vector.load %arg3[%c0_12, %c384] : memref<32x512xf32, #tpu.memory_space<vmem>>, vector<32x128xf32>
    tpu.vector_store %arg3[%c0_12, %c384], %61 {strides = array<i32>} : memref<32x512xf32, #tpu.memory_space<vmem>>, vector<32x128xf32>,
    return
  }
  func.func @transform_0(%arg0: i32) -> (i32, i32) {
    %c0_i32 = arith.constant 0 : i32
    %c0_i32_0 = arith.constant 0 : i32
    return %arg0, %c0_i32 : i32, i32
  }
  func.func @transform_1(%arg0: i32) -> (i32, i32, i32) {
    %c0_i32 = arith.constant 0 : i32
    %c0_i32_0 = arith.constant 0 : i32
    %c0_i32_1 = arith.constant 0 : i32
    %c0_i32_2 = arith.constant 0 : i32
    return %c0_i32, %c0_i32_0, %c0_i32_1 : i32, i32, i32
  }
  func.func @transform_2(%arg0: i32) -> (i32, i32) {
    %c0_i32 = arith.constant 0 : i32
    %c0_i32_0 = arith.constant 0 : i32
    return %arg0, %c0_i32 : i32, i32
  }
}

</mosaic_0001>

<llo_original>
// kernel: tpu_custom_call.1
$region0: #{tpu_custom_call.1}
  #allocation0 [shape = 'u32[]', space=smem, size = 0x4, offset = 0x4, fixed_abs, tag = 'smem constant byte address 0x4 - core index']
  #allocation1 [shape = 'u32[144,128]{1,0:T(1,128)}', space=vmem, size = 0x12000, scoped, tag = 'internal scratch']
  %s0 = inlined_call_operand.vmem [shape: f32[128,4], index: 0, kind: input, shape index: {}]
  %s1 = inlined_call_operand.vmem [shape: f32[3,4,128], index: 1, kind: input, shape index: {}]
  %s2 = inlined_call_operand.hbm [shape: f32[128,512], index: 2, kind: output, shape index: {}]
  %s3 = sld [smem:[#allocation0]]
  $region41: #{tpu_custom_call.1} parent=0
    _
  %s5 = ssub.s32 1, %s3
  %s6 = scalar_select 0, %s5, %s3
  $region1: #{tpu_custom_call.1} parent=0
    #allocation2 [shape = 'u8[131072]{0}', space=vmem, size = 0x20000, scoped, tag = 'output window, operand 0']
    #allocation3 [shape = 's32[2]{0}', space=sflag, size = 0x8, scoped, tag = 'scoped memory for tpu_custom_call.1']
    %7 = vsyncpa [#allocation3], 0
    %s8 = scalar_lea.sflag [#allocation3], 1
    %9 = vsyncpa %s8, 0
    loop: start=0, step=1, limit=6
    $region2: #{tpu_custom_call.1} parent=1 // loop_pre_header
      _
    $region3: #{tpu_custom_call.1} parent=1 // loop_header
      %s11 = sphi 0, %s15
      %p12 = scmp.ge.s32.totalorder %s11, 6
      %s21 = sphi 0, %s23
      %s24 = sphi 0, %s21
      %s25 = sphi 0, %s24
      %s41 = sphi 0, %s25
      %s45 = sphi 0, %s45
      %s47 = sphi 0, %s45
      %s48 = sphi 0, %s47
      %s62 = sphi 0, %s48
      %s68 = sphi 0, %s70
      %s71 = sphi 0, %s68
      %s72 = sphi 0, %s71
      %s88 = sphi 0, %s72
    $region4: #{tpu_custom_call.1} parent=1 // loop_header_branch
      %14 = sbr.rel (%p12) target = $region8
    $region5: #{tpu_custom_call.1} parent=1 // loop_body
      %s16 = ssub.s32 %s11, 1
      %s17 = ssub.s32 %s11, 2
      %s18 = sadd.s32 %s11, 1
      %s19 = ssub.s32 %s11, %s18
      %p20 = scmp.eq.s32.totalorder %s19, 0
      %s22 = sadd.s32 %s21, 1
      %s23 = scalar_select %p20, %s21, %s22
      %p26 = pneg %p20
      %p27 = scmp.eq.s32.totalorder %s11, 3
      %p28 = por %p26, %p27
      %p29 = scmp.ne.s32.totalorder %s21, %s24
      %p30 = scmp.eq.s32.totalorder %s11, 0
      %p31 = por %p29, %p30
      %p32 = scmp.ne.s32.totalorder %s21, %s24
      %p33 = scmp.eq.s32.totalorder %s16, 3
      %p34 = por %p32, %p33
      %p35 = scmp.ne.s32.totalorder %s24, %s25
      %p36 = scmp.eq.s32.totalorder %s16, 0
      %p37 = por %p35, %p36
      %p38 = scmp.ne.s32.totalorder %s24, %s25
      %p39 = scmp.eq.s32.totalorder %s17, 3
      %p40 = por %p38, %p39
      %p42 = scmp.ne.s32.totalorder %s25, %s41
      %p43 = scmp.eq.s32.totalorder %s17, 0
      %p44 = por %p42, %p43
      %s46 = sadd.s32 %s45, 1
      %p49 = scmp.eq.s32.totalorder %s11, 3
      %p50 = scmp.ne.s32.totalorder %s45, %s47
      %p51 = scmp.eq.s32.totalorder %s11, 0
      %p52 = por %p50, %p51
      %p53 = scmp.ne.s32.totalorder %s45, %s47
      %p54 = scmp.eq.s32.totalorder %s16, 3
      %p55 = por %p53, %p54
      %p56 = scmp.ne.s32.totalorder %s47, %s48
      %p57 = scmp.eq.s32.totalorder %s16, 0
      %p58 = por %p56, %p57
      %p59 = scmp.ne.s32.totalorder %s47, %s48
      %p60 = scmp.eq.s32.totalorder %s17, 3
      %p61 = por %p59, %p60
      %p63 = scmp.ne.s32.totalorder %s48, %s62
      %p64 = scmp.eq.s32.totalorder %s17, 0
      %p65 = por %p63, %p64
      %s66 = ssub.s32 %s11, %s18
      %p67 = scmp.eq.s32.totalorder %s66, 0
      %s69 = sadd.s32 %s68, 1
      %s70 = scalar_select %p67, %s68, %s69
      %p73 = pneg %p67
      %p74 = scmp.eq.s32.totalorder %s11, 3
      %p75 = por %p73, %p74
      %p76 = scmp.ne.s32.totalorder %s68, %s71
      %p77 = scmp.eq.s32.totalorder %s11, 0
      %p78 = por %p76, %p77
      %p79 = scmp.ne.s32.totalorder %s68, %s71
      %p80 = scmp.eq.s32.totalorder %s16, 3
      %p81 = por %p79, %p80
      %p82 = scmp.ne.s32.totalorder %s71, %s72
      %p83 = scmp.eq.s32.totalorder %s16, 0
      %p84 = por %p82, %p83
      %p85 = scmp.ne.s32.totalorder %s71, %s72
      %p86 = scmp.eq.s32.totalorder %s17, 3
      %p87 = por %p85, %p86
      %p89 = scmp.ne.s32.totalorder %s72, %s88
      %p90 = scmp.eq.s32.totalorder %s17, 0
      %p91 = por %p89, %p90
      %p92 = scmp.le.s32.totalorder 1, %s11
      %p93 = scmp.lt.s32.totalorder %s11, 5
      %p94 = pnand %p92, %p93
      %p95 = pneg %p94
      // Predicated region
      $region9: #{tpu_custom_call.1} parent=5 // pred_check
        _
      $region10: #{tpu_custom_call.1} parent=5 // pred_check_branch
        %97 = sbr.rel (%p94) target = $region12
      $region11: #{tpu_custom_call.1} parent=5 // pred_region
        %s98 = ssub.s32 %s11, 1
        // Predicated region
        $region13: #{tpu_custom_call.1} parent=11 // pred_check
          %p99 = pneg %p58
        $region14: #{tpu_custom_call.1} parent=11 // pred_check_branch
          %101 = sbr.rel (%p99) target = $region16
        $region15: #{tpu_custom_call.1} parent=11 // pred_region
          _
        $region16: #{tpu_custom_call.1} parent=11 // pred_fallthru
          _
      $region12: #{tpu_custom_call.1} parent=5 // pred_fallthru
        _
      %p102 = scmp.lt.s32.totalorder %s11, 4
      // Predicated region
      $region17: #{tpu_custom_call.1} parent=5 // pred_check
        %p103 = pneg %p102
      $region18: #{tpu_custom_call.1} parent=5 // pred_check_branch
        %105 = sbr.rel (%p103) target = $region20
      $region19: #{tpu_custom_call.1} parent=5 // pred_region
        // Predicated region
        $region21: #{tpu_custom_call.1} parent=19 // pred_check
          %p106 = pneg %p31
        $region22: #{tpu_custom_call.1} parent=19 // pred_check_branch
          %108 = sbr.rel (%p106) target = $region24
        $region23: #{tpu_custom_call.1} parent=19 // pred_region
          %s109 = smul.u32 4, %s11
          %p110 = scmp.lt.s32.totalorder %s109, 15
          %s111 = scalar_select %p110, %s109, 15
          %s112 = smul.addr %s111, 8
          %s113 = scalar_lea.vmem %s0, %s112
          %s114 = smul.u32 4, %s11
        $region24: #{tpu_custom_call.1} parent=19 // pred_fallthru
          _
      $region20: #{tpu_custom_call.1} parent=5 // pred_fallthru
        _
      %p115 = scmp.le.s32.totalorder 1, %s11
      %p116 = scmp.lt.s32.totalorder %s11, 5
      %p117 = pnand %p115, %p116
      %p118 = pneg %p117
      // Predicated region
      $region25: #{tpu_custom_call.1} parent=5 // pred_check
        _
      $region26: #{tpu_custom_call.1} parent=5 // pred_check_branch
        %120 = sbr.rel (%p117) target = $region28
      $region27: #{tpu_custom_call.1} parent=5 // pred_region
        %s121 = ssub.s32 %s11, 1
        %s122 = smul.u32 4, %s16
        %p123 = scmp.lt.s32.totalorder %s122, 15
        %s124 = scalar_select %p123, %s122, 15
        %s125 = smul.addr %s124, 8
        %s126 = scalar_lea.vmem %s0, %s125
        %p127 = pneg %p37
        %p128 = pneg %p34
        %p129 = pneg %p58
        %p130 = pneg %p55
        %p131 = pneg %p84
        %p132 = pneg %p81
        %s133 = sand.u32 %s71, 1
        %s134 = scalar_lea.sflag [#allocation3], %s133
        %s135 = sand.u32 %s71, 1
        %s136 = smul.addr %s135, 128
        %s137 = scalar_lea.vmem [#allocation2], %s136
        %s138 = smul.u32 4, %s16
        %p139 = scmp.lt.s32.totalorder %s138, 15
        %s140 = scalar_select %p139, %s138, 15
        %s141 = smul.addr %s140, 8
        %s142 = scalar_lea.vmem %s0, %s141
        %s143 = smul.u32 4, %s16
        %s144 = smul.u32 4, %s16
        %v145 = vld [vmem:[%s142] sm:$0xff]
        %v146 = vld [vmem:[%s142 + $0x8] sm:$0xff]
        %v147 = vld [vmem:[%s142 + $0x10] sm:$0xff]
        %v148 = vld [vmem:[%s142 + $0x18] sm:$0xff]
        %v149 = vld [vmem:[%s1] sm:$0xf]
        %s150 = scalar_lea.vmem %s1, 4
        %v151 = vld [vmem:[%s150] sm:$0xf]
        %s152 = scalar_lea.vmem %s1, 8
        %v153 = vld [vmem:[%s152] sm:$0xf]
        %155 = vset.pattern.permute.xlu0 0
        %156 = vperm.xlu0 %155, %v145
        %v157 = vpop.permute.xlu0 %156
        %160 = vset.pattern.permute.xlu0 0
        %161 = vperm.xlu0 %160, %v146
        %v162 = vpop.permute.xlu0 %161
        %165 = vset.pattern.permute.xlu0 0
        %166 = vperm.xlu0 %165, %v147
        %v167 = vpop.permute.xlu0 %166
        %170 = vset.pattern.permute.xlu0 0
        %171 = vperm.xlu0 %170, %v148
        %v172 = vpop.permute.xlu0 %171
        %v174 = vlaneseq
        %v175 = vshrl.u32 %v174, 7
        %v176 = vsub.s32 0, %v175
        %v177 = vrot.slane %v149, %v176
        %v178 = vsub.f32 %v157, %v177
        %v179 = vsub.f32 %v162, %v177
        %v180 = vsub.f32 %v167, %v177
        %v181 = vsub.f32 %v172, %v177
        %v182 = vmul.f32 %v178, %v178
        %v183 = vmul.f32 %v179, %v179
        %v184 = vmul.f32 %v180, %v180
        %v185 = vmul.f32 %v181, %v181
        %v186 = vlaneseq
        %v187 = vshrl.u32 %v186, 7
        %v188 = vsub.s32 0, %v187
        %v189 = vrot.slane %v153, %v188
        %v190 = vmul.f32 %v182, %v189
        %v191 = vmul.f32 %v183, %v189
        %v192 = vmul.f32 %v184, %v189
        %v193 = vmul.f32 %v185, %v189
        %v194 = vmul.f32 %v190, 1.442695
        %v195 = vpow.pop %v194
        %v196 = vmul.f32 %v191, 1.442695
        %v197 = vpow.pop %v196
        %v198 = vmul.f32 %v192, 1.442695
        %v199 = vpow.pop %v198
        %v200 = vmul.f32 %v193, 1.442695
        %v201 = vpow.pop %v200
        %v202 = vlaneseq
        %v203 = vshrl.u32 %v202, 7
        %v204 = vsub.s32 0, %v203
        %v205 = vrot.slane %v151, %v204
        %v206 = vmul.f32 %v195, %v205
        %v207 = vmul.f32 %v197, %v205
        %v208 = vmul.f32 %v199, %v205
        %v209 = vmul.f32 %v201, %v205
        %210 = vst [vmem:[%s137] sm:$0xff] %v206
        %211 = vst [vmem:[%s137 + $0x20] sm:$0xff] %v207
        %212 = vst [vmem:[%s137 + $0x40] sm:$0xff] %v208
        %213 = vst [vmem:[%s137 + $0x60] sm:$0xff] %v209
        %214 = vset.pattern.permute.xlu0 1
        %215 = vperm.xlu0 %214, %v145
        %v216 = vpop.permute.xlu0 %215
        %218 = vset.pattern.permute.xlu0 1
        %219 = vperm.xlu0 %218, %v146
        %v220 = vpop.permute.xlu0 %219
        %222 = vset.pattern.permute.xlu0 1
        %223 = vperm.xlu0 %222, %v147
        %v224 = vpop.permute.xlu0 %223
        %226 = vset.pattern.permute.xlu0 1
        %227 = vperm.xlu0 %226, %v148
        %v228 = vpop.permute.xlu0 %227
        %v230 = vlaneseq
        %v231 = vshrl.u32 %v230, 7
        %v232 = vsub.s32 1, %v231
        %v233 = vrot.slane %v149, %v232
        %v234 = vsub.f32 %v216, %v233
        %v235 = vsub.f32 %v220, %v233
        %v236 = vsub.f32 %v224, %v233
        %v237 = vsub.f32 %v228, %v233
        %v238 = vmul.f32 %v234, %v234
        %v239 = vmul.f32 %v235, %v235
        %v240 = vmul.f32 %v236, %v236
        %v241 = vmul.f32 %v237, %v237
        %v242 = vlaneseq
        %v243 = vshrl.u32 %v242, 7
        %v244 = vsub.s32 1, %v243
        %v245 = vrot.slane %v153, %v244
        %v246 = vmul.f32 %v238, %v245
        %v247 = vmul.f32 %v239, %v245
        %v248 = vmul.f32 %v240, %v245
        %v249 = vmul.f32 %v241, %v245
        %v250 = vmul.f32 %v246, 1.442695
        %v251 = vpow.pop %v250
        %v252 = vmul.f32 %v247, 1.442695
        %v253 = vpow.pop %v252
        %v254 = vmul.f32 %v248, 1.442695
        %v255 = vpow.pop %v254
        %v256 = vmul.f32 %v249, 1.442695
        %v257 = vpow.pop %v256
        %v258 = vlaneseq
        %v259 = vshrl.u32 %v258, 7
        %v260 = vsub.s32 1, %v259
        %v261 = vrot.slane %v151, %v260
        %v262 = vmul.f32 %v251, %v261
        %v263 = vmul.f32 %v253, %v261
        %v264 = vmul.f32 %v255, %v261
        %v265 = vmul.f32 %v257, %v261
        %266 = vst [vmem:[%s137 + $0x8] sm:$0xff] %v262
        %267 = vst [vmem:[%s137 + $0x28] sm:$0xff] %v263
        %268 = vst [vmem:[%s137 + $0x48] sm:$0xff] %v264
        %269 = vst [vmem:[%s137 + $0x68] sm:$0xff] %v265
        %270 = vset.pattern.permute.xlu0 2
        %271 = vperm.xlu0 %270, %v145
        %v272 = vpop.permute.xlu0 %271
        %274 = vset.pattern.permute.xlu0 2
        %275 = vperm.xlu0 %274, %v146
        %v276 = vpop.permute.xlu0 %275
        %278 = vset.pattern.permute.xlu0 2
        %279 = vperm.xlu0 %278, %v147
        %v280 = vpop.permute.xlu0 %279
        %282 = vset.pattern.permute.xlu0 2
        %283 = vperm.xlu0 %282, %v148
        %v284 = vpop.permute.xlu0 %283
        %v286 = vlaneseq
        %v287 = vshrl.u32 %v286, 7
        %v288 = vsub.s32 2, %v287
        %v289 = vrot.slane %v149, %v288
        %v290 = vsub.f32 %v272, %v289
        %v291 = vsub.f32 %v276, %v289
        %v292 = vsub.f32 %v280, %v289
        %v293 = vsub.f32 %v284, %v289
        %v294 = vmul.f32 %v290, %v290
        %v295 = vmul.f32 %v291, %v291
        %v296 = vmul.f32 %v292, %v292
        %v297 = vmul.f32 %v293, %v293
        %v298 = vlaneseq
        %v299 = vshrl.u32 %v298, 7
        %v300 = vsub.s32 2, %v299
        %v301 = vrot.slane %v153, %v300
        %v302 = vmul.f32 %v294, %v301
        %v303 = vmul.f32 %v295, %v301
        %v304 = vmul.f32 %v296, %v301
        %v305 = vmul.f32 %v297, %v301
        %v306 = vmul.f32 %v302, 1.442695
        %v307 = vpow.pop %v306
        %v308 = vmul.f32 %v303, 1.442695
        %v309 = vpow.pop %v308
        %v310 = vmul.f32 %v304, 1.442695
        %v311 = vpow.pop %v310
        %v312 = vmul.f32 %v305, 1.442695
        %v313 = vpow.pop %v312
        %v314 = vlaneseq
        %v315 = vshrl.u32 %v314, 7
        %v316 = vsub.s32 2, %v315
        %v317 = vrot.slane %v151, %v316
        %v318 = vmul.f32 %v307, %v317
        %v319 = vmul.f32 %v309, %v317
        %v320 = vmul.f32 %v311, %v317
        %v321 = vmul.f32 %v313, %v317
        %322 = vst [vmem:[%s137 + $0x10] sm:$0xff] %v318
        %323 = vst [vmem:[%s137 + $0x30] sm:$0xff] %v319
        %324 = vst [vmem:[%s137 + $0x50] sm:$0xff] %v320
        %325 = vst [vmem:[%s137 + $0x70] sm:$0xff] %v321
        %326 = vset.pattern.permute.xlu0 3
        %327 = vperm.xlu0 %326, %v145
        %v328 = vpop.permute.xlu0 %327
        %330 = vset.pattern.permute.xlu0 3
        %331 = vperm.xlu0 %330, %v146
        %v332 = vpop.permute.xlu0 %331
        %334 = vset.pattern.permute.xlu0 3
        %335 = vperm.xlu0 %334, %v147
        %v336 = vpop.permute.xlu0 %335
        %338 = vset.pattern.permute.xlu0 3
        %339 = vperm.xlu0 %338, %v148
        %v340 = vpop.permute.xlu0 %339
        %v342 = vlaneseq
        %v343 = vshrl.u32 %v342, 7
        %v344 = vsub.s32 3, %v343
        %v345 = vrot.slane %v149, %v344
        %v346 = vsub.f32 %v328, %v345
        %v347 = vsub.f32 %v332, %v345
        %v348 = vsub.f32 %v336, %v345
        %v349 = vsub.f32 %v340, %v345
        %v350 = vmul.f32 %v346, %v346
        %v351 = vmul.f32 %v347, %v347
        %v352 = vmul.f32 %v348, %v348
        %v353 = vmul.f32 %v349, %v349
        %v354 = vlaneseq
        %v355 = vshrl.u32 %v354, 7
        %v356 = vsub.s32 3, %v355
        %v357 = vrot.slane %v153, %v356
        %v358 = vmul.f32 %v350, %v357
        %v359 = vmul.f32 %v351, %v357
        %v360 = vmul.f32 %v352, %v357
        %v361 = vmul.f32 %v353, %v357
        %v362 = vmul.f32 %v358, 1.442695
        %v363 = vpow.pop %v362
        %v364 = vmul.f32 %v359, 1.442695
        %v365 = vpow.pop %v364
        %v366 = vmul.f32 %v360, 1.442695
        %v367 = vpow.pop %v366
        %v368 = vmul.f32 %v361, 1.442695
        %v369 = vpow.pop %v368
        %v370 = vlaneseq
        %v371 = vshrl.u32 %v370, 7
        %v372 = vsub.s32 3, %v371
        %v373 = vrot.slane %v151, %v372
        %v374 = vmul.f32 %v363, %v373
        %v375 = vmul.f32 %v365, %v373
        %v376 = vmul.f32 %v367, %v373
        %v377 = vmul.f32 %v369, %v373
        %378 = vst [vmem:[%s137 + $0x18] sm:$0xff] %v374
        %379 = vst [vmem:[%s137 + $0x38] sm:$0xff] %v375
        %380 = vst [vmem:[%s137 + $0x58] sm:$0xff] %v376
        %381 = vst [vmem:[%s137 + $0x78] sm:$0xff] %v377
        %s382 = sand.u32 %s71, 1
        %s383 = scalar_lea.sflag [#allocation3], %s382
        %s384 = sand.u32 %s71, 1
        %s385 = smul.addr %s384, 128
        %s386 = scalar_lea.vmem [#allocation2], %s385
        // Predicated region
        $region29: #{tpu_custom_call.1} parent=27 // pred_check
          %p387 = pneg %p81
        $region30: #{tpu_custom_call.1} parent=27 // pred_check_branch
          %389 = sbr.rel (%p387) target = $region32
        $region31: #{tpu_custom_call.1} parent=27 // pred_region
          %s390 = smul.u32 4, %s16
          %s392 = ssub.s32 2048, 2048
          %393 = vsyncadd %s383, %s392
          %s394 = smul.addr %s390, 4
          %s395 = smul.addr %s394, 128
          %s396 = scalar_lea.hbm %s2, %s395
          %s397 = sshll.u32 %s386, 4
          %s398 = int_to_ptr.vmem [resolvable:$true] %s397
          %403 = dma.vmem_to_hbm [thread:$0]  %s398, 2048, %s396, %s383, 512, 512, 32
        $region32: #{tpu_custom_call.1} parent=27 // pred_fallthru
          _
      $region28: #{tpu_custom_call.1} parent=5 // pred_fallthru
        _
      %p404 = scmp.le.s32.totalorder 2, %s11
      // Predicated region
      $region33: #{tpu_custom_call.1} parent=5 // pred_check
        %p405 = pneg %p404
      $region34: #{tpu_custom_call.1} parent=5 // pred_check_branch
        %407 = sbr.rel (%p405) target = $region36
      $region35: #{tpu_custom_call.1} parent=5 // pred_region
        %s408 = ssub.s32 %s11, 2
        // Predicated region
        $region37: #{tpu_custom_call.1} parent=35 // pred_check
          %p409 = pneg %p87
        $region38: #{tpu_custom_call.1} parent=35 // pred_check_branch
          %411 = sbr.rel (%p409) target = $region40
        $region39: #{tpu_custom_call.1} parent=35 // pred_region
          %s412 = sand.u32 %s72, 1
          %s413 = scalar_lea.sflag [#allocation3], %s412
          %s414 = sand.u32 %s72, 1
          %s415 = smul.addr %s414, 128
          %s416 = scalar_lea.vmem [#allocation2], %s415
          %417 = dma.done %s413, 2048
        $region40: #{tpu_custom_call.1} parent=35 // pred_fallthru
          _
      $region36: #{tpu_custom_call.1} parent=5 // pred_fallthru
        _
    $region6: #{tpu_custom_call.1} parent=1 // loop_footer
      %s15 = sadd.s32 1, %s11
    $region7: #{tpu_custom_call.1} parent=1 // loop_footer_branch
      %10 = sbr.rel target = $region3
    $region8: #{tpu_custom_call.1} parent=1 // loop_exit
      _
    %418 = vsyncpa [#allocation3], 1
    %s419 = scalar_lea.sflag [#allocation3], 1
    %420 = vsyncpa %s419, 1

</llo_original>
